<compile_context>
chip_gen: v5e
topology: v5e:2x2
jax: 0.10.0
libtpu: 0.0.40
codegen_flags: <defaults>
</compile_context>

<pallas_src>
import functools
import math

import jax
import jax.numpy as jnp
from jax.experimental import pallas as pl
from jax.experimental.pallas import tpu as pltpu


def _round_up(n, m):
    return ((n + m - 1) // m) * m


def make_encoder_kernel(num_heads, head_dim, C, T, Bb, Qp, Cp, Fp):
    """Whole forward for Bb batch elements in one invocation.

    Pre-packed operands (built once in prepack_params):
      wqkv: (Cp, Qp) = [Wq^T*scale | Wk^T | Wv^T] zero-padded, bf16
      bqkv: (1, Qp) f32          wo: (C, Cp) bf16    bo: (1, Cp) f32
      w1:   (Cp, Fp) bf16        b1: (1, Fp) f32
      w2:   (Fp, Fp) bf16        b2: (1, Fp) f32
    """
    H, D = num_heads, head_dim
    M = Bb * T

    def kernel(x_ref, wqkv_ref, bqkv_ref, wo_ref, bo_ref,
               w1_ref, b1_ref, w2_ref, b2_ref, o_ref):
        f32, bf16 = jnp.float32, jnp.bfloat16

        x = x_ref[...]                                              # (M, Cp) bf16

        # ---- fused QKV projection: one (M,Cp)@(Cp,Qp) MXU matmul -----------
        qkv = jnp.dot(x, wqkv_ref[...], preferred_element_type=f32)
        qkv = (qkv + bqkv_ref[...]).astype(bf16)                    # (M, Qp)

        # ---- move heads onto a leading batch dim g = h*Bb + b --------------
        # (lane slices + leading-dim reshapes only; no lane-splitting reshapes)
        def heads(base):
            return jnp.concatenate(
                [qkv[:, base + h * D: base + (h + 1) * D].reshape(Bb, T, D)
                 for h in range(H)], axis=0)                        # (H*Bb, T, D)

        q_g = heads(0)            # 1/sqrt(D) already folded into wq / bq
        k_g = heads(C)
        v_g = heads(2 * C)

        # ---- scores / softmax / P@V batched over all heads and batch -------
        s = jnp.einsum('gtd,gsd->gts', q_g, k_g,
                       preferred_element_type=f32)                  # (G, T, T) f32
        s = s - jnp.max(s, axis=-1, keepdims=True)
        p = jnp.exp(s)
        p = p * pl.reciprocal(jnp.sum(p, axis=-1, keepdims=True), approx=True)
        pv = jnp.einsum('gts,gsd->gtd', p.astype(bf16), v_g,
                        preferred_element_type=f32)                 # (G, T, D) f32

        # ---- re-assemble (M, C) slab; ONE full-depth out-projection --------
        attn_cat = jnp.concatenate(
            [pv[h * Bb:(h + 1) * Bb].reshape(M, D) for h in range(H)],
            axis=-1)                                                # (M, C) f32
        attn = jnp.dot(attn_cat.astype(bf16), wo_ref[...],
                       preferred_element_type=f32) + bo_ref[...]    # (M, Cp) f32

        # ---- MLP: Linear1 -> ReLU -> Linear2 (lane-dense widths) -----------
        h1 = jnp.dot(attn.astype(bf16), w1_ref[...],
                     preferred_element_type=f32) + b1_ref[...]
        h1 = jnp.maximum(h1, 0.0)                                   # (M, Fp) f32
        out = jnp.dot(h1.astype(bf16), w2_ref[...],
                      preferred_element_type=f32) + b2_ref[...]

        o_ref[...] = out.astype(o_ref.dtype)                        # bf16, lane-dense

    return kernel


def prepack_params(params, num_heads):
    """One-time weight packing: transpose, per-block concat, scale-fold,
    zero-pad to 128 lanes, bf16 cast.  Run ONCE, outside the jitted path."""
    C = params["wo"].shape[0]          # in_dim
    F = params["w2"].shape[0]          # out_dim
    D = C // num_heads
    Cp, Fp, Qp = _round_up(C, 128), _round_up(F, 128), _round_up(3 * C, 128)
    scale = 1.0 / math.sqrt(D)
    f32, bf16 = jnp.float32, jnp.bfloat16

    wqkv, bqkv = params["wqkv"], params["bqkv"]          # (3C, C), (3C,)
    wq, wk, wv = wqkv[0:C], wqkv[C:2 * C], wqkv[2 * C:3 * C]
    bq, bk, bv = bqkv[0:C], bqkv[C:2 * C], bqkv[2 * C:3 * C]

    # Fold 1/sqrt(D) into the query projection BEFORE the bf16 cast.
    w_cat = jnp.concatenate([wq.T * scale, wk.T, wv.T], axis=1)     # (C, 3C)
    b_cat = jnp.concatenate([bq * scale, bk, bv]).reshape(1, 3 * C)

    return {
        "wqkv": jnp.pad(w_cat, ((0, Cp - C), (0, Qp - 3 * C))).astype(bf16),
        "bqkv": jnp.pad(b_cat, ((0, 0), (0, Qp - 3 * C))).astype(f32),
        "wo":   jnp.pad(params["wo"].T, ((0, 0), (0, Cp - C))).astype(bf16),
        "bo":   jnp.pad(params["bo"].reshape(1, C), ((0, 0), (0, Cp - C))).astype(f32),
        "w1":   jnp.pad(params["w1"].T, ((0, Cp - C), (0, Fp - F))).astype(bf16),
        "b1":   jnp.pad(params["b1"].reshape(1, F), ((0, 0), (0, Fp - F))).astype(f32),
        "w2":   jnp.pad(params["w2"].T, ((0, Fp - F), (0, Fp - F))).astype(bf16),
        "b2":   jnp.pad(params["b2"].reshape(1, F), ((0, 0), (0, Fp - F))).astype(f32),
    }


def swin_transformer_encoder_forward(x, packed, *, num_heads, out_dim,
                                     batch_block=None):
    """x: (B, in_dim, T), packed weights from prepack_params -> (B, out_dim, T)."""
    B, C, T = x.shape
    assert C % num_heads == 0
    D = C // num_heads
    F = out_dim
    Cp = packed["w1"].shape[0]
    Fp = packed["w1"].shape[1]
    Qp = packed["wqkv"].shape[1]

    Bb = B if batch_block is None else batch_block     # batch elems per grid step
    assert B % Bb == 0
    M = Bb * T

    # Activations: (B,C,T) -> (B,T,C) -> pad lanes -> bf16 -> fold batch into M.
    x_btc = jnp.transpose(x, (0, 2, 1))
    x_btc = jnp.pad(x_btc, ((0, 0), (0, 0), (0, Cp - C))).astype(jnp.bfloat16)
    x_mc = x_btc.reshape(B * T, Cp)

    kernel = make_encoder_kernel(num_heads, D, C, T, Bb, Qp, Cp, Fp)
    const = lambda i: (0, 0)

    out = pl.pallas_call(
        kernel,
        out_shape=jax.ShapeDtypeStruct((B * T, Fp), jnp.bfloat16),
        grid_spec=pltpu.PrefetchScalarGridSpec(
            num_scalar_prefetch=0,
            grid=(B // Bb,),
            in_specs=[
                pl.BlockSpec((M, Cp), lambda i: (i, 0)),     # activations slab
                pl.BlockSpec((Cp, Qp), const),               # packed QKV weights
                pl.BlockSpec((1, Qp), const),                # packed QKV bias
                pl.BlockSpec((C, Cp), const),                # Wo^T
                pl.BlockSpec((1, Cp), const),                # bo
                pl.BlockSpec((Cp, Fp), const),               # W1^T
                pl.BlockSpec((1, Fp), const),                # b1
                pl.BlockSpec((Fp, Fp), const),               # W2^T
                pl.BlockSpec((1, Fp), const),                # b2
            ],
            out_specs=pl.BlockSpec((M, Fp), lambda i: (i, 0)),
        ),
        compiler_params=pltpu.CompilerParams(
            dimension_semantics=("parallel",),
            vmem_limit_bytes=32 * 1024 * 1024,
        ),
    )(x_mc, packed["wqkv"], packed["bqkv"], packed["wo"], packed["bo"],
      packed["w1"], packed["b1"], packed["w2"], packed["b2"])

    # Drop lane padding, return f32 (B, out_dim, T) to match the torch module.
    out = out[:, :F].astype(jnp.float32).reshape(B, T, F)
    return jnp.transpose(out, (0, 2, 1))


def init_params(key, in_dim, out_dim):
    """Parameter shapes mirror the PyTorch module exactly."""
    ks = jax.random.split(key, 8)
    s = 0.1
    n = jax.random.normal
    return {
        "wqkv": s * n(ks[0], (3 * in_dim, in_dim), jnp.float32),  # in_proj_weight
        "bqkv": s * n(ks[1], (3 * in_dim,), jnp.float32),         # in_proj_bias
        "wo":   s * n(ks[2], (in_dim, in_dim), jnp.float32),      # out_proj.weight
        "bo":   s * n(ks[3], (in_dim,), jnp.float32),             # out_proj.bias
        "w1":   s * n(ks[4], (out_dim, in_dim), jnp.float32),     # linear1.weight
        "b1":   s * n(ks[5], (out_dim,), jnp.float32),            # linear1.bias
        "w2":   s * n(ks[6], (out_dim, out_dim), jnp.float32),    # linear2.weight
        "b2":   s * n(ks[7], (out_dim,), jnp.float32),            # linear2.bias
    }


def reference_forward(x, p, num_heads):
    """Pure-JAX f32 reference mirroring torch.nn.MultiheadAttention + MLP."""
    B, C, T = x.shape
    D = C // num_heads
    xs = jnp.transpose(x, (0, 2, 1))                       # (B, T, C)
    qkv = xs @ p["wqkv"].T + p["bqkv"]
    q, k, v = jnp.split(qkv, 3, axis=-1)
    qh = q.reshape(B, T, num_heads, D).transpose(0, 2, 1, 3)
    kh = k.reshape(B, T, num_heads, D).transpose(0, 2, 1, 3)
    vh = v.reshape(B, T, num_heads, D).transpose(0, 2, 1, 3)
    s = jnp.einsum("bhqd,bhkd->bhqk", qh, kh) / jnp.sqrt(jnp.float32(D))
    a = jax.nn.softmax(s, axis=-1)
    o = jnp.einsum("bhqk,bhkd->bhqd", a, vh).transpose(0, 2, 1, 3).reshape(B, T, C)
    o = o @ p["wo"].T + p["bo"]
    h = jnp.maximum(o @ p["w1"].T + p["b1"], 0.0)
    out = h @ p["w2"].T + p["b2"]
    return jnp.transpose(out, (0, 2, 1))                   # (B, out_dim, T)


if __name__ == "__main__":
    B, in_dim, T = 2, 32, 16
    out_dim, num_heads = 32, 4

    key = jax.random.PRNGKey(0)
    kx, kp = jax.random.split(key)
    x = jax.random.normal(kx, (B, in_dim, T), jnp.float32)   # (B, in_dim, T)
    params = init_params(kp, in_dim, out_dim)

    # Weight packing runs ONCE, outside the per-call jitted path.
    packed = prepack_params(params, num_heads)
    packed = jax.tree_util.tree_map(jax.block_until_ready, packed)

    fwd = jax.jit(functools.partial(swin_transformer_encoder_forward,
                                    num_heads=num_heads, out_dim=out_dim))
    y = fwd(x, packed)
    jax.block_until_ready(y)

    y_ref = reference_forward(x, params, num_heads)
    assert y.shape == (B, out_dim, T)
    # bf16 MXU operands / bf16 output + approx reciprocal => bf16-level tolerance.
    assert jnp.allclose(y, y_ref, rtol=5e-2, atol=2e-2), (
        float(jnp.max(jnp.abs(y - y_ref))))

    print("KERNEL_OK")
</pallas_src>

<mosaic_0001>
module attributes {stable_mosaic.version = 11 : i64} {
  func.func @kernel(%arg0: i32, %arg1: memref<32x128xbf16, #tpu.memory_space<vmem>>, %arg2: memref<128x128xbf16, #tpu.memory_space<vmem>>, %arg3: memref<1x128xf32, #tpu.memory_space<vmem>>, %arg4: memref<32x128xbf16, #tpu.memory_space<vmem>>, %arg5: memref<1x128xf32, #tpu.memory_space<vmem>>, %arg6: memref<128x128xbf16, #tpu.memory_space<vmem>>, %arg7: memref<1x128xf32, #tpu.memory_space<vmem>>, %arg8: memref<128x128xbf16, #tpu.memory_space<vmem>>, %arg9: memref<1x128xf32, #tpu.memory_space<vmem>>, %arg10: memref<32x128xbf16, #tpu.memory_space<vmem>>) attributes {dimension_semantics = [#tpu.dimension_semantics<parallel>], iteration_bounds = array<i64: 1>, scalar_prefetch = 0 : i64, scratch_operands = 0 : i64, tpu.core_type = #tpu.core_type<tc>, window_params = [{transform_indices = @transform_0, window_bounds = array<i64: 32, 128>}, {pipeline_mode = #tpu.pipeline_mode<synchronous>, transform_indices = @transform_1, window_bounds = array<i64: 128, 128>}, {pipeline_mode = #tpu.pipeline_mode<synchronous>, transform_indices = @transform_2, window_bounds = array<i64: 1, 128>}, {pipeline_mode = #tpu.pipeline_mode<synchronous>, transform_indices = @transform_3, window_bounds = array<i64: 32, 128>}, {pipeline_mode = #tpu.pipeline_mode<synchronous>, transform_indices = @transform_4, window_bounds = array<i64: 1, 128>}, {pipeline_mode = #tpu.pipeline_mode<synchronous>, transform_indices = @transform_5, window_bounds = array<i64: 128, 128>}, {pipeline_mode = #tpu.pipeline_mode<synchronous>, transform_indices = @transform_6, window_bounds = array<i64: 1, 128>}, {pipeline_mode = #tpu.pipeline_mode<synchronous>, transform_indices = @transform_7, window_bounds = array<i64: 128, 128>}, {pipeline_mode = #tpu.pipeline_mode<synchronous>, transform_indices = @transform_8, window_bounds = array<i64: 1, 128>}, {transform_indices = @transform_9, window_bounds = array<i64: 32, 128>}]} {
    %c0 = arith.constant 0 : index
    %c0_0 = arith.constant 0 : index
    %0 = vector.load %arg1[%c0, %c0_0] : memref<32x128xbf16, #tpu.memory_space<vmem>>, vector<32x128xbf16>
    %c0_1 = arith.constant 0 : index
    %c0_2 = arith.constant 0 : index
    %1 = vector.load %arg2[%c0_1, %c0_2] : memref<128x128xbf16, #tpu.memory_space<vmem>>, vector<128x128xbf16>
    %cst = arith.constant dense<0.000000e+00> : vector<32x128xf32>
    %2 = tpu.matmul %0, %1, %cst {dimension_numbers = #tpu.dot_dimension_numbers<[1], [0], [0], [1], [0, 0, 1, 1], [], []>} : vector<32x128xbf16>, vector<128x128xbf16>, vector<32x128xf32> -> vector<32x128xf32>
    %c0_3 = arith.constant 0 : index
    %c0_4 = arith.constant 0 : index
    %3 = vector.load %arg3[%c0_3, %c0_4] : memref<1x128xf32, #tpu.memory_space<vmem>>, vector<1x128xf32>
    %4 = vector.broadcast %3 : vector<1x128xf32> to vector<32x128xf32>
    %5 = arith.addf %2, %4 : vector<32x128xf32>
    %6 = arith.truncf %5 : vector<32x128xf32> to vector<32x128xbf16>
    %7 = vector.extract_strided_slice %6 {offsets = [0, 0], sizes = [32, 8], strides = [1, 1]} : vector<32x128xbf16> to vector<32x8xbf16>
    %8 = vector.shape_cast %7 : vector<32x8xbf16> to vector<2x16x8xbf16>
    %9 = vector.extract_strided_slice %6 {offsets = [0, 8], sizes = [32, 8], strides = [1, 1]} : vector<32x128xbf16> to vector<32x8xbf16>
    %10 = vector.shape_cast %9 : vector<32x8xbf16> to vector<2x16x8xbf16>
    %11 = vector.extract_strided_slice %6 {offsets = [0, 16], sizes = [32, 8], strides = [1, 1]} : vector<32x128xbf16> to vector<32x8xbf16>
    %12 = vector.shape_cast %11 : vector<32x8xbf16> to vector<2x16x8xbf16>
    %13 = vector.extract_strided_slice %6 {offsets = [0, 24], sizes = [32, 8], strides = [1, 1]} : vector<32x128xbf16> to vector<32x8xbf16>
    %14 = vector.shape_cast %13 : vector<32x8xbf16> to vector<2x16x8xbf16>
    %15 = tpu.concatenate %8, %10, %12, %14 in 0 : vector<2x16x8xbf16>, vector<2x16x8xbf16>, vector<2x16x8xbf16>, vector<2x16x8xbf16> -> vector<8x16x8xbf16>
    %16 = vector.extract_strided_slice %6 {offsets = [0, 32], sizes = [32, 8], strides = [1, 1]} : vector<32x128xbf16> to vector<32x8xbf16>
    %17 = vector.shape_cast %16 : vector<32x8xbf16> to vector<2x16x8xbf16>
    %18 = vector.extract_strided_slice %6 {offsets = [0, 40], sizes = [32, 8], strides = [1, 1]} : vector<32x128xbf16> to vector<32x8xbf16>
    %19 = vector.shape_cast %18 : vector<32x8xbf16> to vector<2x16x8xbf16>
    %20 = vector.extract_strided_slice %6 {offsets = [0, 48], sizes = [32, 8], strides = [1, 1]} : vector<32x128xbf16> to vector<32x8xbf16>
    %21 = vector.shape_cast %20 : vector<32x8xbf16> to vector<2x16x8xbf16>
    %22 = vector.extract_strided_slice %6 {offsets = [0, 56], sizes = [32, 8], strides = [1, 1]} : vector<32x128xbf16> to vector<32x8xbf16>
    %23 = vector.shape_cast %22 : vector<32x8xbf16> to vector<2x16x8xbf16>
    %24 = tpu.concatenate %17, %19, %21, %23 in 0 : vector<2x16x8xbf16>, vector<2x16x8xbf16>, vector<2x16x8xbf16>, vector<2x16x8xbf16> -> vector<8x16x8xbf16>
    %25 = vector.extract_strided_slice %6 {offsets = [0, 64], sizes = [32, 8], strides = [1, 1]} : vector<32x128xbf16> to vector<32x8xbf16>
    %26 = vector.shape_cast %25 : vector<32x8xbf16> to vector<2x16x8xbf16>
    %27 = vector.extract_strided_slice %6 {offsets = [0, 72], sizes = [32, 8], strides = [1, 1]} : vector<32x128xbf16> to vector<32x8xbf16>
    %28 = vector.shape_cast %27 : vector<32x8xbf16> to vector<2x16x8xbf16>
    %29 = vector.extract_strided_slice %6 {offsets = [0, 80], sizes = [32, 8], strides = [1, 1]} : vector<32x128xbf16> to vector<32x8xbf16>
    %30 = vector.shape_cast %29 : vector<32x8xbf16> to vector<2x16x8xbf16>
    %31 = vector.extract_strided_slice %6 {offsets = [0, 88], sizes = [32, 8], strides = [1, 1]} : vector<32x128xbf16> to vector<32x8xbf16>
    %32 = vector.shape_cast %31 : vector<32x8xbf16> to vector<2x16x8xbf16>
    %33 = tpu.concatenate %26, %28, %30, %32 in 0 : vector<2x16x8xbf16>, vector<2x16x8xbf16>, vector<2x16x8xbf16>, vector<2x16x8xbf16> -> vector<8x16x8xbf16>
    "tpu.trace_start"() <{level = 10 : i32, message = "gtd,gsd->gts"}> : () -> ()
    %cst_5 = arith.constant dense<0.000000e+00> : vector<8x16x16xf32>
    %34 = tpu.matmul %15, %24, %cst_5 {dimension_numbers = #tpu.dot_dimension_numbers<[2], [2], [1], [1], [0, 0, 0, 1, 1, 1], [0], [0]>} : vector<8x16x8xbf16>, vector<8x16x8xbf16>, vector<8x16x16xf32> -> vector<8x16x16xf32>
    "tpu.trace_stop"() : () -> ()
    %cst_6 = arith.constant dense<0xFF800000> : vector<8x16xf32>
    %35 = vector.multi_reduction <maximumf>, %34, %cst_6 [2] : vector<8x16x16xf32> to vector<8x16xf32>
    %36 = vector.shape_cast %35 : vector<8x16xf32> to vector<8x16x1xf32>
    %37 = vector.broadcast %36 : vector<8x16x1xf32> to vector<8x16x16xf32>
    %38 = arith.subf %34, %37 : vector<8x16x16xf32>
    %39 = math.exp %38 : vector<8x16x16xf32>
    %cst_7 = arith.constant dense<0.000000e+00> : vector<8x16xf32>
    %40 = vector.multi_reduction <add>, %39, %cst_7 [2] : vector<8x16x16xf32> to vector<8x16xf32>
    %41 = vector.shape_cast %40 : vector<8x16xf32> to vector<8x16x1xf32>
    %42 = tpu.reciprocal %41 {approx = true} : vector<8x16x1xf32> -> vector<8x16x1xf32>
    %43 = vector.broadcast %42 : vector<8x16x1xf32> to vector<8x16x16xf32>
    %44 = arith.mulf %39, %43 : vector<8x16x16xf32>
    %45 = arith.truncf %44 : vector<8x16x16xf32> to vector<8x16x16xbf16>
    "tpu.trace_start"() <{level = 10 : i32, message = "gts,gsd->gtd"}> : () -> ()
    %cst_8 = arith.constant dense<0.000000e+00> : vector<8x16x8xf32>
    %46 = tpu.matmul %45, %33, %cst_8 {dimension_numbers = #tpu.dot_dimension_numbers<[2], [1], [1], [2], [0, 0, 0, 1, 1, 2], [0], [0]>} : vector<8x16x16xbf16>, vector<8x16x8xbf16>, vector<8x16x8xf32> -> vector<8x16x8xf32>
    "tpu.trace_stop"() : () -> ()
    %47 = vector.extract_strided_slice %46 {offsets = [0, 0, 0], sizes = [2, 16, 8], strides = [1, 1, 1]} : vector<8x16x8xf32> to vector<2x16x8xf32>
    %48 = vector.shape_cast %47 : vector<2x16x8xf32> to vector<32x8xf32>
    %49 = vector.extract_strided_slice %46 {offsets = [2, 0, 0], sizes = [2, 16, 8], strides = [1, 1, 1]} : vector<8x16x8xf32> to vector<2x16x8xf32>
    %50 = vector.shape_cast %49 : vector<2x16x8xf32> to vector<32x8xf32>
    %51 = vector.extract_strided_slice %46 {offsets = [4, 0, 0], sizes = [2, 16, 8], strides = [1, 1, 1]} : vector<8x16x8xf32> to vector<2x16x8xf32>
    %52 = vector.shape_cast %51 : vector<2x16x8xf32> to vector<32x8xf32>
    %53 = vector.extract_strided_slice %46 {offsets = [6, 0, 0], sizes = [2, 16, 8], strides = [1, 1, 1]} : vector<8x16x8xf32> to vector<2x16x8xf32>
    %54 = vector.shape_cast %53 : vector<2x16x8xf32> to vector<32x8xf32>
    %55 = tpu.concatenate %48, %50, %52, %54 in 1 : vector<32x8xf32>, vector<32x8xf32>, vector<32x8xf32>, vector<32x8xf32> -> vector<32x32xf32>
    %56 = arith.truncf %55 : vector<32x32xf32> to vector<32x32xbf16>
    %c0_9 = arith.constant 0 : index
    %c0_10 = arith.constant 0 : index
    %57 = vector.load %arg4[%c0_9, %c0_10] : memref<32x128xbf16, #tpu.memory_space<vmem>>, vector<32x128xbf16>
    %cst_11 = arith.constant dense<0.000000e+00> : vector<32x128xf32>
    %58 = tpu.matmul %56, %57, %cst_11 {dimension_numbers = #tpu.dot_dimension_numbers<[1], [0], [0], [1], [0, 0, 1, 1], [], []>} : vector<32x32xbf16>, vector<32x128xbf16>, vector<32x128xf32> -> vector<32x128xf32>
    %c0_12 = arith.constant 0 : index
    %c0_13 = arith.constant 0 : index
    %59 = vector.load %arg5[%c0_12, %c0_13] : memref<1x128xf32, #tpu.memory_space<vmem>>, vector<1x128xf32>
    %60 = vector.broadcast %59 : vector<1x128xf32> to vector<32x128xf32>
    %61 = arith.addf %58, %60 : vector<32x128xf32>
    %62 = arith.truncf %61 : vector<32x128xf32> to vector<32x128xbf16>
    %c0_14 = arith.constant 0 : index
    %c0_15 = arith.constant 0 : index
    %63 = vector.load %arg6[%c0_14, %c0_15] : memref<128x128xbf16, #tpu.memory_space<vmem>>, vector<128x128xbf16>
    %cst_16 = arith.constant dense<0.000000e+00> : vector<32x128xf32>
    %64 = tpu.matmul %62, %63, %cst_16 {dimension_numbers = #tpu.dot_dimension_numbers<[1], [0], [0], [1], [0, 0, 1, 1], [], []>} : vector<32x128xbf16>, vector<128x128xbf16>, vector<32x128xf32> -> vector<32x128xf32>
    %c0_17 = arith.constant 0 : index
    %c0_18 = arith.constant 0 : index
    %65 = vector.load %arg7[%c0_17, %c0_18] : memref<1x128xf32, #tpu.memory_space<vmem>>, vector<1x128xf32>
    %66 = vector.broadcast %65 : vector<1x128xf32> to vector<32x128xf32>
    %67 = arith.addf %64, %66 : vector<32x128xf32>
    %cst_19 = arith.constant 0.000000e+00 : f32
    %68 = vector.broadcast %cst_19 : f32 to vector<32x128xf32>
    %69 = arith.maximumf %67, %68 : vector<32x128xf32>
    %70 = arith.truncf %69 : vector<32x128xf32> to vector<32x128xbf16>
    %c0_20 = arith.constant 0 : index
    %c0_21 = arith.constant 0 : index
    %71 = vector.load %arg8[%c0_20, %c0_21] : memref<128x128xbf16, #tpu.memory_space<vmem>>, vector<128x128xbf16>
    %cst_22 = arith.constant dense<0.000000e+00> : vector<32x128xf32>
    %72 = tpu.matmul %70, %71, %cst_22 {dimension_numbers = #tpu.dot_dimension_numbers<[1], [0], [0], [1], [0, 0, 1, 1], [], []>} : vector<32x128xbf16>, vector<128x128xbf16>, vector<32x128xf32> -> vector<32x128xf32>
    %c0_23 = arith.constant 0 : index
    %c0_24 = arith.constant 0 : index
    %73 = vector.load %arg9[%c0_23, %c0_24] : memref<1x128xf32, #tpu.memory_space<vmem>>, vector<1x128xf32>
    %74 = vector.broadcast %73 : vector<1x128xf32> to vector<32x128xf32>
    %75 = arith.addf %72, %74 : vector<32x128xf32>
    %76 = arith.truncf %75 : vector<32x128xf32> to vector<32x128xbf16>
    %c0_25 = arith.constant 0 : index
    %c0_26 = arith.constant 0 : index
    %77 = vector.load %arg10[%c0_25, %c0_26] : memref<32x128xbf16, #tpu.memory_space<vmem>>, vector<32x128xbf16>
    tpu.vector_store %arg10[%c0_25, %c0_26], %76 {strides = array<i32>} : memref<32x128xbf16, #tpu.memory_space<vmem>>, vector<32x128xbf16>,
    return
  }
  func.func @transform_0(%arg0: i32) -> (i32, i32) {
    %c0_i32 = arith.constant 0 : i32
    %c0_i32_0 = arith.constant 0 : i32
    return %arg0, %c0_i32 : i32, i32
  }
  func.func @transform_1(%arg0: i32) -> (i32, i32) {
    %c0_i32 = arith.constant 0 : i32
    %c0_i32_0 = arith.constant 0 : i32
    %c0_i32_1 = arith.constant 0 : i32
    return %c0_i32, %c0_i32_0 : i32, i32
  }
  func.func @transform_2(%arg0: i32) -> (i32, i32) {
    %c0_i32 = arith.constant 0 : i32
    %c0_i32_0 = arith.constant 0 : i32
    %c0_i32_1 = arith.constant 0 : i32
    return %c0_i32, %c0_i32_0 : i32, i32
  }
  func.func @transform_3(%arg0: i32) -> (i32, i32) {
    %c0_i32 = arith.constant 0 : i32
    %c0_i32_0 = arith.constant 0 : i32
    %c0_i32_1 = arith.constant 0 : i32
    return %c0_i32, %c0_i32_0 : i32, i32
  }
  func.func @transform_4(%arg0: i32) -> (i32, i32) {
    %c0_i32 = arith.constant 0 : i32
    %c0_i32_0 = arith.constant 0 : i32
    %c0_i32_1 = arith.constant 0 : i32
    return %c0_i32, %c0_i32_0 : i32, i32
  }
  func.func @transform_5(%arg0: i32) -> (i32, i32) {
    %c0_i32 = arith.constant 0 : i32
    %c0_i32_0 = arith.constant 0 : i32
    %c0_i32_1 = arith.constant 0 : i32
    return %c0_i32, %c0_i32_0 : i32, i32
  }
  func.func @transform_6(%arg0: i32) -> (i32, i32) {
    %c0_i32 = arith.constant 0 : i32
    %c0_i32_0 = arith.constant 0 : i32
    %c0_i32_1 = arith.constant 0 : i32
    return %c0_i32, %c0_i32_0 : i32, i32
  }
  func.func @transform_7(%arg0: i32) -> (i32, i32) {
    %c0_i32 = arith.constant 0 : i32
    %c0_i32_0 = arith.constant 0 : i32
    %c0_i32_1 = arith.constant 0 : i32
    return %c0_i32, %c0_i32_0 : i32, i32
  }
  func.func @transform_8(%arg0: i32) -> (i32, i32) {
    %c0_i32 = arith.constant 0 : i32
    %c0_i32_0 = arith.constant 0 : i32
    %c0_i32_1 = arith.constant 0 : i32
    return %c0_i32, %c0_i32_0 : i32, i32
  }
  func.func @transform_9(%arg0: i32) -> (i32, i32) {
    %c0_i32 = arith.constant 0 : i32
    %c0_i32_0 = arith.constant 0 : i32
    return %arg0, %c0_i32 : i32, i32
  }
}

</mosaic_0001>

<llo_original>
// kernel: swin_transformer_encoder_forward.1
$region0: #{swin_transformer_encoder_forward.1}
  #allocation0 [shape = 'u32[]', space=smem, size = 0x4, offset = 0x4, fixed_abs, tag = 'smem constant byte address 0x4 - core index']
  #allocation1 [shape = 'u32[72,128]{1,0:T(1,128)}', space=vmem, size = 0x9000, scoped, tag = 'internal scratch']
  %s0 = inlined_call_operand.vmem [shape: bf16[32,128], index: 0, kind: input, shape index: {}]
  %s1 = inlined_call_operand.vmem [shape: bf16[128,128], index: 1, kind: input, shape index: {}]
  %s2 = inlined_call_operand.vmem [shape: f32[1,128], index: 2, kind: input, shape index: {}]
  %s3 = inlined_call_operand.vmem [shape: bf16[32,128], index: 3, kind: input, shape index: {}]
  %s4 = inlined_call_operand.vmem [shape: f32[1,128], index: 4, kind: input, shape index: {}]
  %s5 = inlined_call_operand.hbm [shape: bf16[128,128], index: 5, kind: input, shape index: {}]
  %s6 = inlined_call_operand.vmem [shape: f32[1,128], index: 6, kind: input, shape index: {}]
  %s7 = inlined_call_operand.hbm [shape: bf16[128,128], index: 7, kind: input, shape index: {}]
  %s8 = inlined_call_operand.vmem [shape: f32[1,128], index: 8, kind: input, shape index: {}]
  %s9 = inlined_call_operand.vmem [shape: bf16[32,128], index: 9, kind: output, shape index: {}]
  %s10 = sld [smem:[#allocation0]]
  $region54: #{swin_transformer_encoder_forward.1} parent=0
    _
  %s12 = ssub.s32 1, %s10
  %s13 = scalar_select 0, %s12, %s10
  $region1: #{swin_transformer_encoder_forward.1} parent=0
    #allocation2 [shape = 'u8[32768]{0}', space=vmem, size = 0x8000, scoped, tag = 'input window, operand 5, single buffered']
    #allocation3 [shape = 's32[1]{0}', space=sflag, size = 0x4, scoped, tag = 'scoped memory for swin_transformer_encoder_forward.1']
    #allocation4 [shape = 'u8[32768]{0}', space=vmem, size = 0x8000, scoped, tag = 'input window, operand 7, single buffered']
    #allocation5 [shape = 's32[1]{0}', space=sflag, size = 0x4, scoped, tag = 'scoped memory for swin_transformer_encoder_forward.1']
    %14 = vsyncpa [#allocation3], 0
    %15 = vsyncpa [#allocation5], 0
    // Predicated region
    $region2: #{swin_transformer_encoder_forward.1} parent=1 // pred_check
      _
    $region3: #{swin_transformer_encoder_forward.1} parent=1 // pred_check_branch
      %17 = sbr.rel (0) target = $region5
    $region4: #{swin_transformer_encoder_forward.1} parent=1 // pred_region
      _
    $region5: #{swin_transformer_encoder_forward.1} parent=1 // pred_fallthru
      _
    // Predicated region
    $region6: #{swin_transformer_encoder_forward.1} parent=1 // pred_check
      _
    $region7: #{swin_transformer_encoder_forward.1} parent=1 // pred_check_branch
      %19 = sbr.rel (0) target = $region9
    $region8: #{swin_transformer_encoder_forward.1} parent=1 // pred_region
      _
    $region9: #{swin_transformer_encoder_forward.1} parent=1 // pred_fallthru
      _
    // Predicated region
    $region10: #{swin_transformer_encoder_forward.1} parent=1 // pred_check
      _
    $region11: #{swin_transformer_encoder_forward.1} parent=1 // pred_check_branch
      %21 = sbr.rel (0) target = $region13
    $region12: #{swin_transformer_encoder_forward.1} parent=1 // pred_region
      _
    $region13: #{swin_transformer_encoder_forward.1} parent=1 // pred_fallthru
      _
    // Predicated region
    $region14: #{swin_transformer_encoder_forward.1} parent=1 // pred_check
      _
    $region15: #{swin_transformer_encoder_forward.1} parent=1 // pred_check_branch
      %23 = sbr.rel (0) target = $region17
    $region16: #{swin_transformer_encoder_forward.1} parent=1 // pred_region
      _
    $region17: #{swin_transformer_encoder_forward.1} parent=1 // pred_fallthru
      _
    // Predicated region
    $region18: #{swin_transformer_encoder_forward.1} parent=1 // pred_check
      _
    $region19: #{swin_transformer_encoder_forward.1} parent=1 // pred_check_branch
      %25 = sbr.rel (0) target = $region21
    $region20: #{swin_transformer_encoder_forward.1} parent=1 // pred_region
      _
    $region21: #{swin_transformer_encoder_forward.1} parent=1 // pred_fallthru
      _
    // Predicated region
    $region22: #{swin_transformer_encoder_forward.1} parent=1 // pred_check
      _
    $region23: #{swin_transformer_encoder_forward.1} parent=1 // pred_check_branch
      %27 = sbr.rel (0) target = $region25
    $region24: #{swin_transformer_encoder_forward.1} parent=1 // pred_region
      %29 = vsyncadd [#allocation3], 0
      %s30 = sshll.u32 %s5, 4
      %s31 = int_to_ptr.hbm [resolvable:$true] %s30
      %s32 = sshll.u32 [#allocation2], 4
      %s33 = int_to_ptr.vmem [resolvable:$true] %s32
      %38 = dma.hbm_to_vmem [thread:$0]  %s31, 1024, %s33, [#allocation3], 64, 64, 4
    $region25: #{swin_transformer_encoder_forward.1} parent=1 // pred_fallthru
      _
    // Predicated region
    $region26: #{swin_transformer_encoder_forward.1} parent=1 // pred_check
      _
    $region27: #{swin_transformer_encoder_forward.1} parent=1 // pred_check_branch
      %40 = sbr.rel (0) target = $region29
    $region28: #{swin_transformer_encoder_forward.1} parent=1 // pred_region
      _
    $region29: #{swin_transformer_encoder_forward.1} parent=1 // pred_fallthru
      _
    // Predicated region
    $region30: #{swin_transformer_encoder_forward.1} parent=1 // pred_check
      _
    $region31: #{swin_transformer_encoder_forward.1} parent=1 // pred_check_branch
      %42 = sbr.rel (0) target = $region33
    $region32: #{swin_transformer_encoder_forward.1} parent=1 // pred_region
      %44 = vsyncadd [#allocation5], 0
      %s45 = sshll.u32 %s7, 4
      %s46 = int_to_ptr.hbm [resolvable:$true] %s45
      %s47 = sshll.u32 [#allocation4], 4
      %s48 = int_to_ptr.vmem [resolvable:$true] %s47
      %53 = dma.hbm_to_vmem [thread:$0]  %s46, 1024, %s48, [#allocation5], 64, 64, 4
    $region33: #{swin_transformer_encoder_forward.1} parent=1 // pred_fallthru
      _
    // Predicated region
    $region34: #{swin_transformer_encoder_forward.1} parent=1 // pred_check
      _
    $region35: #{swin_transformer_encoder_forward.1} parent=1 // pred_check_branch
      %55 = sbr.rel (0) target = $region37
    $region36: #{swin_transformer_encoder_forward.1} parent=1 // pred_region
      _
    $region37: #{swin_transformer_encoder_forward.1} parent=1 // pred_fallthru
      _
    // Predicated region
    $region38: #{swin_transformer_encoder_forward.1} parent=1 // pred_check
      _
    $region39: #{swin_transformer_encoder_forward.1} parent=1 // pred_check_branch
      %57 = sbr.rel (0) target = $region41
    $region40: #{swin_transformer_encoder_forward.1} parent=1 // pred_region
      %59 = dma.done [#allocation3], 1024
    $region41: #{swin_transformer_encoder_forward.1} parent=1 // pred_fallthru
      _
    // Predicated region
    $region42: #{swin_transformer_encoder_forward.1} parent=1 // pred_check
      _
    $region43: #{swin_transformer_encoder_forward.1} parent=1 // pred_check_branch
      %61 = sbr.rel (0) target = $region45
    $region44: #{swin_transformer_encoder_forward.1} parent=1 // pred_region
      %63 = dma.done [#allocation5], 1024
    $region45: #{swin_transformer_encoder_forward.1} parent=1 // pred_fallthru
      _
    %v65 = vld [vmem:[%s0] sm:$0xf]
    %v66 = vld [vmem:[%s0 + $0x4] sm:$0xf]
    %v67 = vld [vmem:[%s0 + $0x8] sm:$0xf]
    %v68 = vld [vmem:[%s0 + $0xc] sm:$0xf]
    %v69 = vld [vmem:[%s1] sm:$0xf]
    %v70 = vld [vmem:[%s1 + $0x4] sm:$0xf]
    %v71 = vld [vmem:[%s1 + $0x8] sm:$0xf]
    %v72 = vld [vmem:[%s1 + $0xc] sm:$0xf]
    %v73 = vld [vmem:[%s1 + $0x10] sm:$0xf]
    %v74 = vld [vmem:[%s1 + $0x14] sm:$0xf]
    %v75 = vld [vmem:[%s1 + $0x18] sm:$0xf]
    %v76 = vld [vmem:[%s1 + $0x1c] sm:$0xf]
    %v77 = vld [vmem:[%s1 + $0x20] sm:$0xf]
    %v78 = vld [vmem:[%s1 + $0x24] sm:$0xf]
    %v79 = vld [vmem:[%s1 + $0x28] sm:$0xf]
    %v80 = vld [vmem:[%s1 + $0x2c] sm:$0xf]
    %v81 = vld [vmem:[%s1 + $0x30] sm:$0xf]
    %v82 = vld [vmem:[%s1 + $0x34] sm:$0xf]
    %v83 = vld [vmem:[%s1 + $0x38] sm:$0xf]
    %v84 = vld [vmem:[%s1 + $0x3c] sm:$0xf]
    %v85 = vld [vmem:[%s2] sm:$0x1]
    %v87 = vperm.slane %v85, 0
    %v93 = vunpack.c.l.b16 %v65
    %v94 = vunpack.c.l.b16 %v66
    %v95 = vunpack.c.l.b16 %v67
    %v96 = vunpack.c.l.b16 %v68
    %v97 = vpack.c.b16 %v94, %v93
    %v98 = vpack.c.b16 %v96, %v95
    %v117 = vunpack.c.l.b16 %v69
    %v118 = vunpack.c.l.b16 %v70
    %v119 = vunpack.c.l.b16 %v71
    %v120 = vunpack.c.l.b16 %v72
    %v121 = vunpack.c.l.b16 %v73
    %v122 = vunpack.c.l.b16 %v74
    %v123 = vunpack.c.l.b16 %v75
    %v124 = vunpack.c.l.b16 %v76
    %v125 = vunpack.c.l.b16 %v77
    %v126 = vunpack.c.l.b16 %v78
    %v127 = vunpack.c.l.b16 %v79
    %v128 = vunpack.c.l.b16 %v80
    %v129 = vunpack.c.l.b16 %v81
    %v130 = vunpack.c.l.b16 %v82
    %v131 = vunpack.c.l.b16 %v83
    %v132 = vunpack.c.l.b16 %v84
    %v133 = vpack.c.b16 %v118, %v117
    %v134 = vpack.c.b16 %v120, %v119
    %v135 = vpack.c.b16 %v122, %v121
    %v136 = vpack.c.b16 %v124, %v123
    %v137 = vpack.c.b16 %v126, %v125
    %v138 = vpack.c.b16 %v128, %v127
    %v139 = vpack.c.b16 %v130, %v129
    %v140 = vpack.c.b16 %v132, %v131
    %149 = vmatpush.bf16.msra.mxu0 %v140
    %150 = vmatpush.bf16.msra.mxu0 %v139
    %151 = vmatpush.bf16.msra.mxu0 %v138
    %152 = vmatpush.bf16.msra.mxu0 %v137
    %153 = vmatpush.bf16.msra.mxu0 %v136
    %154 = vmatpush.bf16.msra.mxu0 %v135
    %155 = vmatpush.bf16.msra.mxu0 %v134
    %156 = vmatpush.bf16.msra.mxu0 %v133
    %157 = vmatmul.bf16.gmra.mxu0 %v97
    %v158 = vpop.f32.mrf.mxu0
    %v159 = vadd.f32 %v87, %v158
    %v160 = vpop.f32.mrf.mxu0
    %v161 = vadd.f32 %v87, %v160
    %162 = vmatmul.bf16.gmra.mxu0 %v98
    %v163 = vpop.f32.mrf.mxu0
    %v164 = vadd.f32 %v87, %v163
    %v165 = vpop.f32.mrf.mxu0
    %v166 = vadd.f32 %v87, %v165
    %167 = vdwg.mxu0
    %v168 = vpack.c.bf16 %v159, %v159
    %v169 = vpack.c.bf16 %v161, %v161
    %v170 = vpack.c.bf16 %v164, %v164
    %v171 = vpack.c.bf16 %v166, %v166
    %176 = vrot.lane.b32.xlu0 %v168, 120
    %v177 = vpop.permute.xlu0 %176
    %178 = vrot.lane.b32.xlu0 %v169, 120
    %v179 = vpop.permute.xlu0 %178
    %180 = vrot.lane.b32.xlu0 %v170, 120
    %v181 = vpop.permute.xlu0 %180
    %182 = vrot.lane.b32.xlu0 %v171, 120
    %v183 = vpop.permute.xlu0 %182
    %184 = vrot.lane.b32.xlu0 %v168, 112
    %v185 = vpop.permute.xlu0 %184
    %186 = vrot.lane.b32.xlu0 %v169, 112
    %v187 = vpop.permute.xlu0 %186
    %188 = vrot.lane.b32.xlu0 %v170, 112
    %v189 = vpop.permute.xlu0 %188
    %190 = vrot.lane.b32.xlu0 %v171, 112
    %v191 = vpop.permute.xlu0 %190
    %192 = vrot.lane.b32.xlu0 %v168, 104
    %v193 = vpop.permute.xlu0 %192
    %194 = vrot.lane.b32.xlu0 %v169, 104
    %v195 = vpop.permute.xlu0 %194
    %196 = vrot.lane.b32.xlu0 %v170, 104
    %v197 = vpop.permute.xlu0 %196
    %198 = vrot.lane.b32.xlu0 %v171, 104
    %v199 = vpop.permute.xlu0 %198
    %v200 = vunpack.c.l.b16 %v168
    %v201 = vunpack.c.l.b16 %v169
    %v202 = vpack.c.b16 %v201, %v200
    %203 = vrot.lane.b32.xlu0 %v202, 96
    %v204 = vpop.permute.xlu0 %203
    %vm205 = vcmask 64512
    %v207 = vsel %vm205, %v202, 0
    %v210 = vsel %vm205, %v204, 0
    %212 = vmatpush.bf16.xpose.msra.mxu0 0
    %213 = vmatpush.bf16.xpose.msra.mxu0 0
    %214 = vmatpush.bf16.xpose.msra.mxu0 0
    %215 = vmatpush.bf16.xpose.msra.mxu0 0
    %216 = vmatpush.bf16.xpose.msra.mxu0 0
    %217 = vmatpush.bf16.xpose.msra.mxu0 0
    %218 = vmatpush.bf16.xpose.msra.mxu0 0
    %219 = vmatpush.bf16.xpose.msra.mxu0 %v210
    %220 = vmatmul.bf16.gmra.mxu0 %v207
    %v221 = vpop.f32.mrf.mxu0
    %v222 = vadd.f32 0.0, %v221
    %v223 = vpop.f32.mrf.mxu0
    %v224 = vadd.f32 0.0, %v223
    %225 = vdwg.mxu0
    %v226 = vunpack.c.l.b16 %v170
    %v227 = vunpack.c.l.b16 %v171
    %v228 = vpack.c.b16 %v227, %v226
    %229 = vrot.lane.b32.xlu0 %v228, 96
    %v230 = vpop.permute.xlu0 %229
    %v232 = vsel %vm205, %v228, 0
    %v235 = vsel %vm205, %v230, 0
    %237 = vmatpush.bf16.xpose.msra.mxu0 0
    %238 = vmatpush.bf16.xpose.msra.mxu0 0
    %239 = vmatpush.bf16.xpose.msra.mxu0 0
    %240 = vmatpush.bf16.xpose.msra.mxu0 0
    %241 = vmatpush.bf16.xpose.msra.mxu0 0
    %242 = vmatpush.bf16.xpose.msra.mxu0 0
    %243 = vmatpush.bf16.xpose.msra.mxu0 0
    %244 = vmatpush.bf16.xpose.msra.mxu0 %v235
    %245 = vmatmul.bf16.gmra.mxu0 %v232
    %v246 = vpop.f32.mrf.mxu0
    %v247 = vadd.f32 0.0, %v246
    %v248 = vpop.f32.mrf.mxu0
    %v249 = vadd.f32 0.0, %v248
    %250 = vdwg.mxu0
    %v251 = vunpack.c.l.b16 %v177
    %v252 = vunpack.c.l.b16 %v179
    %v253 = vpack.c.b16 %v252, %v251
    %254 = vrot.lane.b32.xlu0 %v253, 96
    %v255 = vpop.permute.xlu0 %254
    %v257 = vsel %vm205, %v253, 0
    %v260 = vsel %vm205, %v255, 0
    %262 = vmatpush.bf16.xpose.msra.mxu0 0
    %263 = vmatpush.bf16.xpose.msra.mxu0 0
    %264 = vmatpush.bf16.xpose.msra.mxu0 0
    %265 = vmatpush.bf16.xpose.msra.mxu0 0
    %266 = vmatpush.bf16.xpose.msra.mxu0 0
    %267 = vmatpush.bf16.xpose.msra.mxu0 0
    %268 = vmatpush.bf16.xpose.msra.mxu0 0
    %269 = vmatpush.bf16.xpose.msra.mxu0 %v260
    %270 = vmatmul.bf16.gmra.mxu0 %v257
    %v271 = vpop.f32.mrf.mxu0
    %v272 = vadd.f32 0.0, %v271
    %v273 = vpop.f32.mrf.mxu0
    %v274 = vadd.f32 0.0, %v273
    %275 = vdwg.mxu0
    %v276 = vunpack.c.l.b16 %v181
    %v277 = vunpack.c.l.b16 %v183
    %v278 = vpack.c.b16 %v277, %v276
    %279 = vrot.lane.b32.xlu0 %v278, 96
    %v280 = vpop.permute.xlu0 %279
    %v282 = vsel %vm205, %v278, 0
    %v285 = vsel %vm205, %v280, 0
    %287 = vmatpush.bf16.xpose.msra.mxu0 0
    %288 = vmatpush.bf16.xpose.msra.mxu0 0
    %289 = vmatpush.bf16.xpose.msra.mxu0 0
    %290 = vmatpush.bf16.xpose.msra.mxu0 0
    %291 = vmatpush.bf16.xpose.msra.mxu0 0
    %292 = vmatpush.bf16.xpose.msra.mxu0 0
    %293 = vmatpush.bf16.xpose.msra.mxu0 0
    %294 = vmatpush.bf16.xpose.msra.mxu0 %v285
    %295 = vmatmul.bf16.gmra.mxu0 %v282
    %v296 = vpop.f32.mrf.mxu0
    %v297 = vadd.f32 0.0, %v296
    %v298 = vpop.f32.mrf.mxu0
    %v299 = vadd.f32 0.0, %v298
    %300 = vdwg.mxu0
    %v301 = vunpack.c.l.b16 %v185
    %v302 = vunpack.c.l.b16 %v187
    %v303 = vpack.c.b16 %v302, %v301
    %304 = vrot.lane.b32.xlu0 %v303, 96
    %v305 = vpop.permute.xlu0 %304
    %v307 = vsel %vm205, %v303, 0
    %v310 = vsel %vm205, %v305, 0
    %312 = vmatpush.bf16.xpose.msra.mxu0 0
    %313 = vmatpush.bf16.xpose.msra.mxu0 0
    %314 = vmatpush.bf16.xpose.msra.mxu0 0
    %315 = vmatpush.bf16.xpose.msra.mxu0 0
    %316 = vmatpush.bf16.xpose.msra.mxu0 0
    %317 = vmatpush.bf16.xpose.msra.mxu0 0
    %318 = vmatpush.bf16.xpose.msra.mxu0 0
    %319 = vmatpush.bf16.xpose.msra.mxu0 %v310
    %320 = vmatmul.bf16.gmra.mxu0 %v307
    %v321 = vpop.f32.mrf.mxu0
    %v322 = vadd.f32 0.0, %v321
    %v323 = vpop.f32.mrf.mxu0
    %v324 = vadd.f32 0.0, %v323
    %325 = vdwg.mxu0
    %v326 = vunpack.c.l.b16 %v189
    %v327 = vunpack.c.l.b16 %v191
    %v328 = vpack.c.b16 %v327, %v326
    %329 = vrot.lane.b32.xlu0 %v328, 96
    %v330 = vpop.permute.xlu0 %329
    %v332 = vsel %vm205, %v328, 0
    %v335 = vsel %vm205, %v330, 0
    %337 = vmatpush.bf16.xpose.msra.mxu0 0
    %338 = vmatpush.bf16.xpose.msra.mxu0 0
    %339 = vmatpush.bf16.xpose.msra.mxu0 0
    %340 = vmatpush.bf16.xpose.msra.mxu0 0
    %341 = vmatpush.bf16.xpose.msra.mxu0 0
    %342 = vmatpush.bf16.xpose.msra.mxu0 0
    %343 = vmatpush.bf16.xpose.msra.mxu0 0
    %344 = vmatpush.bf16.xpose.msra.mxu0 %v335
    %345 = vmatmul.bf16.gmra.mxu0 %v332
    %v346 = vpop.f32.mrf.mxu0
    %v347 = vadd.f32 0.0, %v346
    %v348 = vpop.f32.mrf.mxu0
    %v349 = vadd.f32 0.0, %v348
    %350 = vdwg.mxu0
    %v351 = vunpack.c.l.b16 %v193
    %v352 = vunpack.c.l.b16 %v195
    %v353 = vpack.c.b16 %v352, %v351
    %354 = vrot.lane.b32.xlu0 %v353, 96
    %v355 = vpop.permute.xlu0 %354
    %v357 = vsel %vm205, %v353, 0
    %v360 = vsel %vm205, %v355, 0
    %362 = vmatpush.bf16.xpose.msra.mxu0 0
    %363 = vmatpush.bf16.xpose.msra.mxu0 0
    %364 = vmatpush.bf16.xpose.msra.mxu0 0
    %365 = vmatpush.bf16.xpose.msra.mxu0 0
    %366 = vmatpush.bf16.xpose.msra.mxu0 0
    %367 = vmatpush.bf16.xpose.msra.mxu0 0
    %368 = vmatpush.bf16.xpose.msra.mxu0 0
    %369 = vmatpush.bf16.xpose.msra.mxu0 %v360
    %370 = vmatmul.bf16.gmra.mxu0 %v357
    %v371 = vpop.f32.mrf.mxu0
    %v372 = vadd.f32 0.0, %v371
    %v373 = vpop.f32.mrf.mxu0
    %v374 = vadd.f32 0.0, %v373
    %375 = vdwg.mxu0
    %v376 = vunpack.c.l.b16 %v197
    %v377 = vunpack.c.l.b16 %v199
    %v378 = vpack.c.b16 %v377, %v376
    %379 = vrot.lane.b32.xlu0 %v378, 96
    %v380 = vpop.permute.xlu0 %379
    %v382 = vsel %vm205, %v378, 0
    %v385 = vsel %vm205, %v380, 0
    %387 = vmatpush.bf16.xpose.msra.mxu0 0
    %388 = vmatpush.bf16.xpose.msra.mxu0 0
    %389 = vmatpush.bf16.xpose.msra.mxu0 0
    %390 = vmatpush.bf16.xpose.msra.mxu0 0
    %391 = vmatpush.bf16.xpose.msra.mxu0 0
    %392 = vmatpush.bf16.xpose.msra.mxu0 0
    %393 = vmatpush.bf16.xpose.msra.mxu0 0
    %394 = vmatpush.bf16.xpose.msra.mxu0 %v385
    %395 = vmatmul.bf16.gmra.mxu0 %v382
    %v396 = vpop.f32.mrf.mxu0
    %v397 = vadd.f32 0.0, %v396
    %v398 = vpop.f32.mrf.mxu0
    %v399 = vadd.f32 0.0, %v398
    %400 = vdwg.mxu0
    %vm401 = vcmask 130048
    %v402 = vsel %vm401, %v222, -inf
    %403 = vmax.xlane.f32.xlu0 %v402
    %v404 = vpop.xlane.xlu0 %403
    %v405 = vsel %vm401, %v224, -inf
    %406 = vmax.xlane.f32.xlu0 %v405
    %v407 = vpop.xlane.xlu0 %406
    %v408 = vsel %vm401, %v247, -inf
    %409 = vmax.xlane.f32.xlu0 %v408
    %v410 = vpop.xlane.xlu0 %409
    %v411 = vsel %vm401, %v249, -inf
    %412 = vmax.xlane.f32.xlu0 %v411
    %v413 = vpop.xlane.xlu0 %412
    %v414 = vsel %vm401, %v272, -inf
    %415 = vmax.xlane.f32.xlu0 %v414
    %v416 = vpop.xlane.xlu0 %415
    %v417 = vsel %vm401, %v274, -inf
    %418 = vmax.xlane.f32.xlu0 %v417
    %v419 = vpop.xlane.xlu0 %418
    %v420 = vsel %vm401, %v297, -inf
    %421 = vmax.xlane.f32.xlu0 %v420
    %v422 = vpop.xlane.xlu0 %421
    %v423 = vsel %vm401, %v299, -inf
    %424 = vmax.xlane.f32.xlu0 %v423
    %v425 = vpop.xlane.xlu0 %424
    %v426 = vsel %vm401, %v322, -inf
    %427 = vmax.xlane.f32.xlu0 %v426
    %v428 = vpop.xlane.xlu0 %427
    %v429 = vsel %vm401, %v324, -inf
    %430 = vmax.xlane.f32.xlu0 %v429
    %v431 = vpop.xlane.xlu0 %430
    %v432 = vsel %vm401, %v347, -inf
    %433 = vmax.xlane.f32.xlu0 %v432
    %v434 = vpop.xlane.xlu0 %433
    %v435 = vsel %vm401, %v349, -inf
    %436 = vmax.xlane.f32.xlu0 %v435
    %v437 = vpop.xlane.xlu0 %436
    %v438 = vsel %vm401, %v372, -inf
    %439 = vmax.xlane.f32.xlu0 %v438
    %v440 = vpop.xlane.xlu0 %439
    %v441 = vsel %vm401, %v374, -inf
    %442 = vmax.xlane.f32.xlu0 %v441
    %v443 = vpop.xlane.xlu0 %442
    %v444 = vsel %vm401, %v397, -inf
    %445 = vmax.xlane.f32.xlu0 %v444
    %v446 = vpop.xlane.xlu0 %445
    %v447 = vsel %vm401, %v399, -inf
    %448 = vmax.xlane.f32.xlu0 %v447
    %v449 = vpop.xlane.xlu0 %448
    %v450 = vsub.f32 %v222, %v404
    %v451 = vsub.f32 %v224, %v407
    %v452 = vsub.f32 %v247, %v410
    %v453 = vsub.f32 %v249, %v413
    %v454 = vsub.f32 %v272, %v416
    %v455 = vsub.f32 %v274, %v419
    %v456 = vsub.f32 %v297, %v422
    %v457 = vsub.f32 %v299, %v425
    %v458 = vsub.f32 %v322, %v428
    %v459 = vsub.f32 %v324, %v431
    %v460 = vsub.f32 %v347, %v434
    %v461 = vsub.f32 %v349, %v437
    %v462 = vsub.f32 %v372, %v440
    %v463 = vsub.f32 %v374, %v443
    %v464 = vsub.f32 %v397, %v446
    %v465 = vsub.f32 %v399, %v449
    %v466 = vmul.f32 %v450, 1.442695
    %v467 = vpow.pop %v466
    %v468 = vmul.f32 %v451, 1.442695
    %v469 = vpow.pop %v468
    %v470 = vmul.f32 %v452, 1.442695
    %v471 = vpow.pop %v470
    %v472 = vmul.f32 %v453, 1.442695
    %v473 = vpow.pop %v472
    %v474 = vmul.f32 %v454, 1.442695
    %v475 = vpow.pop %v474
    %v476 = vmul.f32 %v455, 1.442695
    %v477 = vpow.pop %v476
    %v478 = vmul.f32 %v456, 1.442695
    %v479 = vpow.pop %v478
    %v480 = vmul.f32 %v457, 1.442695
    %v481 = vpow.pop %v480
    %v482 = vmul.f32 %v458, 1.442695
    %v483 = vpow.pop %v482
    %v484 = vmul.f32 %v459, 1.442695
    %v485 = vpow.pop %v484
    %v486 = vmul.f32 %v460, 1.442695
    %v487 = vpow.pop %v486
    %v488 = vmul.f32 %v461, 1.442695
    %v489 = vpow.pop %v488
    %v490 = vmul.f32 %v462, 1.442695
    %v491 = vpow.pop %v490
    %v492 = vmul.f32 %v463, 1.442695
    %v493 = vpow.pop %v492
    %v494 = vmul.f32 %v464, 1.442695
    %v495 = vpow.pop %v494
    %v496 = vmul.f32 %v465, 1.442695
    %v497 = vpow.pop %v496
    %v498 = vsel %vm401, %v467, 0.0
    %499 = vadd.xlane.f32.xlu0 %v498
    %v500 = vpop.xlane.xlu0 %499
    %v501 = vsel %vm401, %v469, 0.0
    %502 = vadd.xlane.f32.xlu0 %v501
    %v503 = vpop.xlane.xlu0 %502
    %v504 = vsel %vm401, %v471, 0.0
    %505 = vadd.xlane.f32.xlu0 %v504
    %v506 = vpop.xlane.xlu0 %505
    %v507 = vsel %vm401, %v473, 0.0
    %508 = vadd.xlane.f32.xlu0 %v507
    %v509 = vpop.xlane.xlu0 %508
    %v510 = vsel %vm401, %v475, 0.0
    %511 = vadd.xlane.f32.xlu0 %v510
    %v512 = vpop.xlane.xlu0 %511
    %v513 = vsel %vm401, %v477, 0.0
    %514 = vadd.xlane.f32.xlu0 %v513
    %v515 = vpop.xlane.xlu0 %514
    %v516 = vsel %vm401, %v479, 0.0
    %517 = vadd.xlane.f32.xlu0 %v516
    %v518 = vpop.xlane.xlu0 %517
    %v519 = vsel %vm401, %v481, 0.0
    %520 = vadd.xlane.f32.xlu0 %v519
    %v521 = vpop.xlane.xlu0 %520
    %v522 = vsel %vm401, %v483, 0.0
    %523 = vadd.xlane.f32.xlu0 %v522
    %v524 = vpop.xlane.xlu0 %523
    %v525 = vsel %vm401, %v485, 0.0
    %526 = vadd.xlane.f32.xlu0 %v525
    %v527 = vpop.xlane.xlu0 %526
    %v528 = vsel %vm401, %v487, 0.0
    %529 = vadd.xlane.f32.xlu0 %v528
    %v530 = vpop.xlane.xlu0 %529
    %v531 = vsel %vm401, %v489, 0.0
    %532 = vadd.xlane.f32.xlu0 %v531
    %v533 = vpop.xlane.xlu0 %532
    %v534 = vsel %vm401, %v491, 0.0
    %535 = vadd.xlane.f32.xlu0 %v534
    %v536 = vpop.xlane.xlu0 %535
    %v537 = vsel %vm401, %v493, 0.0
    %538 = vadd.xlane.f32.xlu0 %v537
    %v539 = vpop.xlane.xlu0 %538
    %v540 = vsel %vm401, %v495, 0.0
    %541 = vadd.xlane.f32.xlu0 %v540
    %v542 = vpop.xlane.xlu0 %541
    %v543 = vsel %vm401, %v497, 0.0
    %544 = vadd.xlane.f32.xlu0 %v543
    %v545 = vpop.xlane.xlu0 %544
    %v546 = vrcp.pop %v500
    %v547 = vrcp.pop %v503
    %v548 = vrcp.pop %v506
    %v549 = vrcp.pop %v509
    %v550 = vrcp.pop %v512
    %v551 = vrcp.pop %v515
    %v552 = vrcp.pop %v518
    %v553 = vrcp.pop %v521
    %v554 = vrcp.pop %v524
    %v555 = vrcp.pop %v527
    %v556 = vrcp.pop %v530
    %v557 = vrcp.pop %v533
    %v558 = vrcp.pop %v536
    %v559 = vrcp.pop %v539
    %v560 = vrcp.pop %v542
    %v561 = vrcp.pop %v545
    %v562 = vmul.f32 %v467, %v546
    %v563 = vmul.f32 %v469, %v547
    %v564 = vmul.f32 %v471, %v548
    %v565 = vmul.f32 %v473, %v549
    %v566 = vmul.f32 %v475, %v550
    %v567 = vmul.f32 %v477, %v551
    %v568 = vmul.f32 %v479, %v552
    %v569 = vmul.f32 %v481, %v553
    %v570 = vmul.f32 %v483, %v554
    %v571 = vmul.f32 %v485, %v555
    %v572 = vmul.f32 %v487, %v556
    %v573 = vmul.f32 %v489, %v557
    %v574 = vmul.f32 %v491, %v558
    %v575 = vmul.f32 %v493, %v559
    %v576 = vmul.f32 %v495, %v560
    %v577 = vmul.f32 %v497, %v561
    %v578 = vpack.c.bf16 %v562, %v562
    %v579 = vpack.c.bf16 %v563, %v563
    %v580 = vpack.c.bf16 %v564, %v564
    %v581 = vpack.c.bf16 %v565, %v565
    %v582 = vpack.c.bf16 %v566, %v566
    %v583 = vpack.c.bf16 %v567, %v567
    %v584 = vpack.c.bf16 %v568, %v568
    %v585 = vpack.c.bf16 %v569, %v569
    %v586 = vpack.c.bf16 %v570, %v570
    %v587 = vpack.c.bf16 %v571, %v571
    %v588 = vpack.c.bf16 %v572, %v572
    %v589 = vpack.c.bf16 %v573, %v573
    %v590 = vpack.c.bf16 %v574, %v574
    %v591 = vpack.c.bf16 %v575, %v575
    %v592 = vpack.c.bf16 %v576, %v576
    %v593 = vpack.c.bf16 %v577, %v577
    %v596 = vunpack.c.l.b16 %v578
    %v597 = vunpack.c.l.b16 %v579
    %v598 = vpack.c.b16 %v597, %v596
    %599 = vrot.lane.b32.xlu0 %v202, 64
    %v600 = vpop.permute.xlu0 %599
    %v603 = vsel %vm401, %v598, 0
    %605 = vmatpush.bf16.msra.mxu0 0
    %606 = vmatpush.bf16.msra.mxu0 0
    %607 = vmatpush.bf16.msra.mxu0 0
    %608 = vmatpush.bf16.msra.mxu0 0
    %609 = vmatpush.bf16.msra.mxu0 0
    %610 = vmatpush.bf16.msra.mxu0 0
    %611 = vmatpush.bf16.msra.mxu0 0
    %612 = vmatpush.bf16.msra.mxu0 %v600
    %613 = vmatmul.bf16.gmra.mxu0 %v603
    %v614 = vpop.f32.mrf.mxu0
    %v615 = vadd.f32 0.0, %v614
    %v616 = vpop.f32.mrf.mxu0
    %v617 = vadd.f32 0.0, %v616
    %618 = vdwg.mxu0
    %v621 = vunpack.c.l.b16 %v580
    %v622 = vunpack.c.l.b16 %v581
    %v623 = vpack.c.b16 %v622, %v621
    %624 = vrot.lane.b32.xlu0 %v228, 64
    %v625 = vpop.permute.xlu0 %624
    %v628 = vsel %vm401, %v623, 0
    %630 = vmatpush.bf16.msra.mxu0 0
    %631 = vmatpush.bf16.msra.mxu0 0
    %632 = vmatpush.bf16.msra.mxu0 0
    %633 = vmatpush.bf16.msra.mxu0 0
    %634 = vmatpush.bf16.msra.mxu0 0
    %635 = vmatpush.bf16.msra.mxu0 0
    %636 = vmatpush.bf16.msra.mxu0 0
    %637 = vmatpush.bf16.msra.mxu0 %v625
    %638 = vmatmul.bf16.gmra.mxu0 %v628
    %v639 = vpop.f32.mrf.mxu0
    %v640 = vadd.f32 0.0, %v639
    %v641 = vpop.f32.mrf.mxu0
    %v642 = vadd.f32 0.0, %v641
    %643 = vdwg.mxu0
    %v646 = vunpack.c.l.b16 %v582
    %v647 = vunpack.c.l.b16 %v583
    %v648 = vpack.c.b16 %v647, %v646
    %649 = vrot.lane.b32.xlu0 %v253, 64
    %v650 = vpop.permute.xlu0 %649
    %v653 = vsel %vm401, %v648, 0
    %655 = vmatpush.bf16.msra.mxu0 0
    %656 = vmatpush.bf16.msra.mxu0 0
    %657 = vmatpush.bf16.msra.mxu0 0
    %658 = vmatpush.bf16.msra.mxu0 0
    %659 = vmatpush.bf16.msra.mxu0 0
    %660 = vmatpush.bf16.msra.mxu0 0
    %661 = vmatpush.bf16.msra.mxu0 0
    %662 = vmatpush.bf16.msra.mxu0 %v650
    %663 = vmatmul.bf16.gmra.mxu0 %v653
    %v664 = vpop.f32.mrf.mxu0
    %v665 = vadd.f32 0.0, %v664
    %v666 = vpop.f32.mrf.mxu0
    %v667 = vadd.f32 0.0, %v666
    %668 = vdwg.mxu0
    %v671 = vunpack.c.l.b16 %v584
    %v672 = vunpack.c.l.b16 %v585
    %v673 = vpack.c.b16 %v672, %v671
    %674 = vrot.lane.b32.xlu0 %v278, 64
    %v675 = vpop.permute.xlu0 %674
    %v678 = vsel %vm401, %v673, 0
    %680 = vmatpush.bf16.msra.mxu0 0
    %681 = vmatpush.bf16.msra.mxu0 0
    %682 = vmatpush.bf16.msra.mxu0 0
    %683 = vmatpush.bf16.msra.mxu0 0
    %684 = vmatpush.bf16.msra.mxu0 0
    %685 = vmatpush.bf16.msra.mxu0 0
    %686 = vmatpush.bf16.msra.mxu0 0
    %687 = vmatpush.bf16.msra.mxu0 %v675
    %688 = vmatmul.bf16.gmra.mxu0 %v678
    %v689 = vpop.f32.mrf.mxu0
    %v690 = vadd.f32 0.0, %v689
    %v691 = vpop.f32.mrf.mxu0
    %v692 = vadd.f32 0.0, %v691
    %693 = vdwg.mxu0
    %v696 = vunpack.c.l.b16 %v586
    %v697 = vunpack.c.l.b16 %v587
    %v698 = vpack.c.b16 %v697, %v696
    %699 = vrot.lane.b32.xlu0 %v303, 64
    %v700 = vpop.permute.xlu0 %699
    %v703 = vsel %vm401, %v698, 0
    %705 = vmatpush.bf16.msra.mxu0 0
    %706 = vmatpush.bf16.msra.mxu0 0
    %707 = vmatpush.bf16.msra.mxu0 0
    %708 = vmatpush.bf16.msra.mxu0 0
    %709 = vmatpush.bf16.msra.mxu0 0
    %710 = vmatpush.bf16.msra.mxu0 0
    %711 = vmatpush.bf16.msra.mxu0 0
    %712 = vmatpush.bf16.msra.mxu0 %v700
    %713 = vmatmul.bf16.gmra.mxu0 %v703
    %v714 = vpop.f32.mrf.mxu0
    %v715 = vadd.f32 0.0, %v714
    %v716 = vpop.f32.mrf.mxu0
    %v717 = vadd.f32 0.0, %v716
    %718 = vdwg.mxu0
    %v721 = vunpack.c.l.b16 %v588
    %v722 = vunpack.c.l.b16 %v589
    %v723 = vpack.c.b16 %v722, %v721
    %724 = vrot.lane.b32.xlu0 %v328, 64
    %v725 = vpop.permute.xlu0 %724
    %v728 = vsel %vm401, %v723, 0
    %730 = vmatpush.bf16.msra.mxu0 0
    %731 = vmatpush.bf16.msra.mxu0 0
    %732 = vmatpush.bf16.msra.mxu0 0
    %733 = vmatpush.bf16.msra.mxu0 0
    %734 = vmatpush.bf16.msra.mxu0 0
    %735 = vmatpush.bf16.msra.mxu0 0
    %736 = vmatpush.bf16.msra.mxu0 0
    %737 = vmatpush.bf16.msra.mxu0 %v725
    %738 = vmatmul.bf16.gmra.mxu0 %v728
    %v739 = vpop.f32.mrf.mxu0
    %v740 = vadd.f32 0.0, %v739
    %v741 = vpop.f32.mrf.mxu0
    %v742 = vadd.f32 0.0, %v741
    %743 = vdwg.mxu0
    %v746 = vunpack.c.l.b16 %v590
    %v747 = vunpack.c.l.b16 %v591
    %v748 = vpack.c.b16 %v747, %v746
    %749 = vrot.lane.b32.xlu0 %v353, 64
    %v750 = vpop.permute.xlu0 %749
    %v753 = vsel %vm401, %v748, 0
    %755 = vmatpush.bf16.msra.mxu0 0
    %756 = vmatpush.bf16.msra.mxu0 0
    %757 = vmatpush.bf16.msra.mxu0 0
    %758 = vmatpush.bf16.msra.mxu0 0
    %759 = vmatpush.bf16.msra.mxu0 0
    %760 = vmatpush.bf16.msra.mxu0 0
    %761 = vmatpush.bf16.msra.mxu0 0
    %762 = vmatpush.bf16.msra.mxu0 %v750
    %763 = vmatmul.bf16.gmra.mxu0 %v753
    %v764 = vpop.f32.mrf.mxu0
    %v765 = vadd.f32 0.0, %v764
    %v766 = vpop.f32.mrf.mxu0
    %v767 = vadd.f32 0.0, %v766
    %768 = vdwg.mxu0
    %v771 = vunpack.c.l.b16 %v592
    %v772 = vunpack.c.l.b16 %v593
    %v773 = vpack.c.b16 %v772, %v771
    %774 = vrot.lane.b32.xlu0 %v378, 64
    %v775 = vpop.permute.xlu0 %774
    %v778 = vsel %vm401, %v773, 0
    %780 = vmatpush.bf16.msra.mxu0 0
    %781 = vmatpush.bf16.msra.mxu0 0
    %782 = vmatpush.bf16.msra.mxu0 0
    %783 = vmatpush.bf16.msra.mxu0 0
    %784 = vmatpush.bf16.msra.mxu0 0
    %785 = vmatpush.bf16.msra.mxu0 0
    %786 = vmatpush.bf16.msra.mxu0 0
    %787 = vmatpush.bf16.msra.mxu0 %v775
    %788 = vmatmul.bf16.gmra.mxu0 %v778
    %v789 = vpop.f32.mrf.mxu0
    %v790 = vadd.f32 0.0, %v789
    %v791 = vpop.f32.mrf.mxu0
    %v792 = vadd.f32 0.0, %v791
    %793 = vdwg.mxu0
    %798 = vrot.lane.b32.xlu0 %v665, 8
    %v799 = vpop.permute.xlu0 %798
    %800 = vrot.lane.b32.xlu0 %v667, 8
    %v801 = vpop.permute.xlu0 %800
    %802 = vrot.lane.b32.xlu0 %v690, 8
    %v803 = vpop.permute.xlu0 %802
    %804 = vrot.lane.b32.xlu0 %v692, 8
    %v805 = vpop.permute.xlu0 %804
    %814 = vrot.lane.b32.xlu0 %v715, 16
    %v815 = vpop.permute.xlu0 %814
    %816 = vrot.lane.b32.xlu0 %v717, 16
    %v817 = vpop.permute.xlu0 %816
    %818 = vrot.lane.b32.xlu0 %v740, 16
    %v819 = vpop.permute.xlu0 %818
    %820 = vrot.lane.b32.xlu0 %v742, 16
    %v821 = vpop.permute.xlu0 %820
    %830 = vrot.lane.b32.xlu0 %v765, 24
    %v831 = vpop.permute.xlu0 %830
    %832 = vrot.lane.b32.xlu0 %v767, 24
    %v833 = vpop.permute.xlu0 %832
    %834 = vrot.lane.b32.xlu0 %v790, 24
    %v835 = vpop.permute.xlu0 %834
    %836 = vrot.lane.b32.xlu0 %v792, 24
    %v837 = vpop.permute.xlu0 %836
    %v842 = vsel %vm205, %v615, %v799
    %v843 = vsel %vm205, %v617, %v801
    %v844 = vsel %vm205, %v640, %v803
    %v845 = vsel %vm205, %v642, %v805
    %v846 = vsel %vm401, %v842, %v815
    %v847 = vsel %vm401, %v843, %v817
    %v848 = vsel %vm401, %v844, %v819
    %v849 = vsel %vm401, %v845, %v821
    %vm850 = vcmask 195584
    %v851 = vsel %vm850, %v846, %v831
    %v852 = vsel %vm850, %v847, %v833
    %v853 = vsel %vm850, %v848, %v835
    %v854 = vsel %vm850, %v849, %v837
    %v855 = vpack.c.bf16 %v852, %v851
    %v856 = vpack.c.bf16 %v854, %v853
    %v857 = vld [vmem:[%s3] sm:$0xf]
    %v858 = vld [vmem:[%s3 + $0x4] sm:$0xf]
    %v859 = vld [vmem:[%s3 + $0x8] sm:$0xf]
    %v860 = vld [vmem:[%s3 + $0xc] sm:$0xf]
    %v861 = vld [vmem:[%s4] sm:$0x1]
    %v863 = vperm.slane %v861, 0
    %v869 = vunpack.c.l.b16 %v857
    %v870 = vunpack.c.l.b16 %v858
    %v871 = vunpack.c.l.b16 %v859
    %v872 = vunpack.c.l.b16 %v860
    %v873 = vpack.c.b16 %v870, %v869
    %v874 = vpack.c.b16 %v872, %v871
    %vm877 = vcmask 261120
    %v879 = vsel %vm877, %v855, 0
    %v882 = vsel %vm877, %v856, 0
    %884 = vmatpush.bf16.msra.mxu0 0
    %885 = vmatpush.bf16.msra.mxu0 0
    %886 = vmatpush.bf16.msra.mxu0 0
    %887 = vmatpush.bf16.msra.mxu0 0
    %888 = vmatpush.bf16.msra.mxu0 0
    %889 = vmatpush.bf16.msra.mxu0 0
    %890 = vmatpush.bf16.msra.mxu0 %v874
    %891 = vmatpush.bf16.msra.mxu0 %v873
    %892 = vmatmul.bf16.gmra.mxu0 %v879
    %v893 = vpop.f32.mrf.mxu0
    %v894 = vadd.f32 %v863, %v893
    %v895 = vpop.f32.mrf.mxu0
    %v896 = vadd.f32 %v863, %v895
    %897 = vmatmul.bf16.gmra.mxu0 %v882
    %v898 = vpop.f32.mrf.mxu0
    %v899 = vadd.f32 %v863, %v898
    %v900 = vpop.f32.mrf.mxu0
    %v901 = vadd.f32 %v863, %v900
    %902 = vdwg.mxu0
    %v903 = vpack.c.bf16 %v896, %v894
    %v904 = vpack.c.bf16 %v901, %v899
    %v905 = vld [vmem:[#allocation2] sm:$0xf]
    %v906 = vld [vmem:[#allocation2 + $0x4] sm:$0xf]
    %v907 = vld [vmem:[#allocation2 + $0x8] sm:$0xf]
    %v908 = vld [vmem:[#allocation2 + $0xc] sm:$0xf]
    %v909 = vld [vmem:[#allocation2 + $0x10] sm:$0xf]
    %v910 = vld [vmem:[#allocation2 + $0x14] sm:$0xf]
    %v911 = vld [vmem:[#allocation2 + $0x18] sm:$0xf]
    %v912 = vld [vmem:[#allocation2 + $0x1c] sm:$0xf]
    %v913 = vld [vmem:[#allocation2 + $0x20] sm:$0xf]
    %v914 = vld [vmem:[#allocation2 + $0x24] sm:$0xf]
    %v915 = vld [vmem:[#allocation2 + $0x28] sm:$0xf]
    %v916 = vld [vmem:[#allocation2 + $0x2c] sm:$0xf]
    %v917 = vld [vmem:[#allocation2 + $0x30] sm:$0xf]
    %v918 = vld [vmem:[#allocation2 + $0x34] sm:$0xf]
    %v919 = vld [vmem:[#allocation2 + $0x38] sm:$0xf]
    %v920 = vld [vmem:[#allocation2 + $0x3c] sm:$0xf]
    %v921 = vld [vmem:[%s6] sm:$0x1]
    %v923 = vperm.slane %v921, 0
    %v941 = vunpack.c.l.b16 %v905
    %v942 = vunpack.c.l.b16 %v906
    %v943 = vunpack.c.l.b16 %v907
    %v944 = vunpack.c.l.b16 %v908
    %v945 = vunpack.c.l.b16 %v909
    %v946 = vunpack.c.l.b16 %v910
    %v947 = vunpack.c.l.b16 %v911
    %v948 = vunpack.c.l.b16 %v912
    %v949 = vunpack.c.l.b16 %v913
    %v950 = vunpack.c.l.b16 %v914
    %v951 = vunpack.c.l.b16 %v915
    %v952 = vunpack.c.l.b16 %v916
    %v953 = vunpack.c.l.b16 %v917
    %v954 = vunpack.c.l.b16 %v918
    %v955 = vunpack.c.l.b16 %v919
    %v956 = vunpack.c.l.b16 %v920
    %v957 = vpack.c.b16 %v942, %v941
    %v958 = vpack.c.b16 %v944, %v943
    %v959 = vpack.c.b16 %v946, %v945
    %v960 = vpack.c.b16 %v948, %v947
    %v961 = vpack.c.b16 %v950, %v949
    %v962 = vpack.c.b16 %v952, %v951
    %v963 = vpack.c.b16 %v954, %v953
    %v964 = vpack.c.b16 %v956, %v955
    %973 = vmatpush.bf16.msra.mxu0 %v964
    %974 = vmatpush.bf16.msra.mxu0 %v963
    %975 = vmatpush.bf16.msra.mxu0 %v962
    %976 = vmatpush.bf16.msra.mxu0 %v961
    %977 = vmatpush.bf16.msra.mxu0 %v960
    %978 = vmatpush.bf16.msra.mxu0 %v959
    %979 = vmatpush.bf16.msra.mxu0 %v958
    %980 = vmatpush.bf16.msra.mxu0 %v957
    %981 = vmatmul.bf16.gmra.mxu0 %v903
    %v982 = vpop.f32.mrf.mxu0
    %v983 = vadd.f32 %v923, %v982
    %v984 = vpop.f32.mrf.mxu0
    %v985 = vadd.f32 %v923, %v984
    %986 = vmatmul.bf16.gmra.mxu0 %v904
    %v987 = vpop.f32.mrf.mxu0
    %v988 = vadd.f32 %v923, %v987
    %v989 = vpop.f32.mrf.mxu0
    %v990 = vadd.f32 %v923, %v989
    %991 = vdwg.mxu0
    %v992 = vmax.f32 %v983, 0.0
    %v993 = vmax.f32 %v985, 0.0
    %v994 = vmax.f32 %v988, 0.0
    %v995 = vmax.f32 %v990, 0.0
    %v996 = vpack.c.bf16 %v993, %v992
    %v997 = vpack.c.bf16 %v995, %v994
    %v998 = vld [vmem:[#allocation4] sm:$0xf]
    %v999 = vld [vmem:[#allocation4 + $0x4] sm:$0xf]
    %v1000 = vld [vmem:[#allocation4 + $0x8] sm:$0xf]
    %v1001 = vld [vmem:[#allocation4 + $0xc] sm:$0xf]
    %v1002 = vld [vmem:[#allocation4 + $0x10] sm:$0xf]
    %v1003 = vld [vmem:[#allocation4 + $0x14] sm:$0xf]
    %v1004 = vld [vmem:[#allocation4 + $0x18] sm:$0xf]
    %v1005 = vld [vmem:[#allocation4 + $0x1c] sm:$0xf]
    %v1006 = vld [vmem:[#allocation4 + $0x20] sm:$0xf]
    %v1007 = vld [vmem:[#allocation4 + $0x24] sm:$0xf]
    %v1008 = vld [vmem:[#allocation4 + $0x28] sm:$0xf]
    %v1009 = vld [vmem:[#allocation4 + $0x2c] sm:$0xf]
    %v1010 = vld [vmem:[#allocation4 + $0x30] sm:$0xf]
    %v1011 = vld [vmem:[#allocation4 + $0x34] sm:$0xf]
    %v1012 = vld [vmem:[#allocation4 + $0x38] sm:$0xf]
    %v1013 = vld [vmem:[#allocation4 + $0x3c] sm:$0xf]
    %v1014 = vld [vmem:[%s8] sm:$0x1]
    %v1016 = vperm.slane %v1014, 0
    %v1034 = vunpack.c.l.b16 %v998
    %v1035 = vunpack.c.l.b16 %v999
    %v1036 = vunpack.c.l.b16 %v1000
    %v1037 = vunpack.c.l.b16 %v1001
    %v1038 = vunpack.c.l.b16 %v1002
    %v1039 = vunpack.c.l.b16 %v1003
    %v1040 = vunpack.c.l.b16 %v1004
    %v1041 = vunpack.c.l.b16 %v1005
    %v1042 = vunpack.c.l.b16 %v1006
    %v1043 = vunpack.c.l.b16 %v1007
    %v1044 = vunpack.c.l.b16 %v1008
    %v1045 = vunpack.c.l.b16 %v1009
    %v1046 = vunpack.c.l.b16 %v1010
    %v1047 = vunpack.c.l.b16 %v1011
    %v1048 = vunpack.c.l.b16 %v1012
    %v1049 = vunpack.c.l.b16 %v1013
    %v1050 = vpack.c.b16 %v1035, %v1034
    %v1051 = vpack.c.b16 %v1037, %v1036
    %v1052 = vpack.c.b16 %v1039, %v1038
    %v1053 = vpack.c.b16 %v1041, %v1040
    %v1054 = vpack.c.b16 %v1043, %v1042
    %v1055 = vpack.c.b16 %v1045, %v1044
    %v1056 = vpack.c.b16 %v1047, %v1046
    %v1057 = vpack.c.b16 %v1049, %v1048
    %1066 = vmatpush.bf16.msra.mxu0 %v1057
    %1067 = vmatpush.bf16.msra.mxu0 %v1056
    %1068 = vmatpush.bf16.msra.mxu0 %v1055
    %1069 = vmatpush.bf16.msra.mxu0 %v1054
    %1070 = vmatpush.bf16.msra.mxu0 %v1053
    %1071 = vmatpush.bf16.msra.mxu0 %v1052
    %1072 = vmatpush.bf16.msra.mxu0 %v1051
    %1073 = vmatpush.bf16.msra.mxu0 %v1050
    %1074 = vmatmul.bf16.gmra.mxu0 %v996
    %v1075 = vpop.f32.mrf.mxu0
    %v1076 = vadd.f32 %v1016, %v1075
    %v1077 = vpop.f32.mrf.mxu0
    %v1078 = vadd.f32 %v1016, %v1077
    %1079 = vmatmul.bf16.gmra.mxu0 %v997
    %v1080 = vpop.f32.mrf.mxu0
    %v1081 = vadd.f32 %v1016, %v1080
    %v1082 = vpop.f32.mrf.mxu0
    %v1083 = vadd.f32 %v1016, %v1082
    %1084 = vdwg.mxu0
    %v1085 = vpack.c.bf16 %v1076, %v1076
    %v1086 = vpack.c.bf16 %v1078, %v1078
    %v1087 = vpack.c.bf16 %v1081, %v1081
    %v1088 = vpack.c.bf16 %v1083, %v1083
    %1089 = vst [vmem:[%s9] sm:$0xf] %v1085
    %1090 = vst [vmem:[%s9 + $0x4] sm:$0xf] %v1086
    %1091 = vst [vmem:[%s9 + $0x8] sm:$0xf] %v1087
    %1092 = vst [vmem:[%s9 + $0xc] sm:$0xf] %v1088
    // Predicated region
    $region46: #{swin_transformer_encoder_forward.1} parent=1 // pred_check
      _
    $region47: #{swin_transformer_encoder_forward.1} parent=1 // pred_check_branch
      %1094 = sbr.rel (0) target = $region49
    $region48: #{swin_transformer_encoder_forward.1} parent=1 // pred_region
      _
    $region49: #{swin_transformer_encoder_forward.1} parent=1 // pred_fallthru
      _
    // Predicated region
    $region50: #{swin_transformer_encoder_forward.1} parent=1 // pred_check
      _
    $region51: #{swin_transformer_encoder_forward.1} parent=1 // pred_check_branch
      %1096 = sbr.rel (0) target = $region53
    $region52: #{swin_transformer_encoder_forward.1} parent=1 // pred_region
      _
    $region53: #{swin_transformer_encoder_forward.1} parent=1 // pred_fallthru
      _
    %1097 = vsyncpa [#allocation3], 1
    %1098 = vsyncpa [#allocation5], 1

</llo_original>
